<compile_context>
chip_gen: v6e
topology: v6e:2x2x1
jax: 0.10.0
libtpu: 0.0.40
codegen_flags: <defaults>
</compile_context>

<pallas_src>
import jax
import jax.numpy as jnp
from jax.experimental import pallas as pl
from jax.experimental.pallas import tpu as pltpu


def vqa_head_kernel(x_ref, w1_ref, b1_ref, w2_ref, b2_ref, o_ref):
    # x_ref:  (C_in, TS)    compute dtype (bf16 or f32)
    # w1_ref: (C_hid, C_in) compute dtype
    # b1_ref: (C_hid, 1) f32; w2_ref: (1, C_hid) f32; b2_ref: (1, 1) f32
    # o_ref:  (1, TS)
    h = jnp.dot(w1_ref[...], x_ref[...], preferred_element_type=jnp.float32)
    h = jnp.maximum(h + b1_ref[...], 0.0)              # bias + ReLU in f32
    o = jnp.dot(w2_ref[...], h, preferred_element_type=jnp.float32)
    o_ref[...] = (o + b2_ref[...]).astype(o_ref.dtype)


def vqa_head(x_ncdhw, w1, b1, w2, b2, *, tile_s=2048,
             compute_dtype=jnp.bfloat16):
    """x_ncdhw: (N, C_in, D, H, W); w1: (C_hid, C_in); b1: (C_hid,);
    w2: (1, C_hid); b2: (1,). Returns (N, 1, D, H, W) in x's dtype."""
    N, C_in, D, H, W = x_ncdhw.shape
    C_hid = w1.shape[0]
    S = D * H * W

    # Spatial tile: multiple of 128 lanes, no larger than (padded) S.
    tile_s = max(128, (tile_s // 128) * 128)
    tile_s = min(tile_s, pl.cdiv(S, 128) * 128)
    S_pad = pl.cdiv(S, tile_s) * tile_s

    # Free, contiguous reshape to channels-first 2D-per-sample layout.
    x_3d = x_ncdhw.reshape(N, C_in, S)
    if S_pad != S:
        # Only materializes a copy when the spatial size isn't tile-aligned.
        x_3d = jnp.pad(x_3d, ((0, 0), (0, 0), (0, S_pad - S)))

    # Large streams in compute dtype (bf16 by default); small params in f32.
    x_3d = x_3d.astype(compute_dtype)
    w1_c = w1.astype(compute_dtype)                 # (C_hid, C_in)
    b1_r = b1.reshape(C_hid, 1).astype(jnp.float32)
    w2_r = w2.astype(jnp.float32)                   # (1, C_hid)
    b2_r = b2.reshape(1, 1).astype(jnp.float32)

    out_3d = pl.pallas_call(
        vqa_head_kernel,
        out_shape=jax.ShapeDtypeStruct((N, 1, S_pad), x_ncdhw.dtype),
        grid_spec=pltpu.PrefetchScalarGridSpec(
            num_scalar_prefetch=0,
            grid=(N, S_pad // tile_s),
            in_specs=[
                # (C_in, tile_s) activation slab; N axis squeezed out.
                pl.BlockSpec((None, C_in, tile_s), lambda n, s: (n, 0, s)),
                # Weights/biases: constant-index blocks stay VMEM-resident.
                pl.BlockSpec((C_hid, C_in), lambda n, s: (0, 0)),
                pl.BlockSpec((C_hid, 1), lambda n, s: (0, 0)),
                pl.BlockSpec((1, C_hid), lambda n, s: (0, 0)),
                pl.BlockSpec((1, 1), lambda n, s: (0, 0)),
            ],
            out_specs=pl.BlockSpec((None, 1, tile_s), lambda n, s: (n, 0, s)),
        ),
        compiler_params=pltpu.CompilerParams(
            dimension_semantics=("parallel", "parallel"),
            # Explicit budget: raises v5e's 16 MiB scoped default, well under
            # v7x's 64 MiB physical VMEM. Actual usage here is a few MiB.
            vmem_limit_bytes=32 * 1024 * 1024,
        ),
    )(x_3d, w1_c, b1_r, w2_r, b2_r)

    out_3d = out_3d[:, :, :S]
    return out_3d.reshape(N, 1, D, H, W)


def vqa_head_ref(x_ncdhw, w1, b1, w2, b2):
    """Pure-JAX fp32 reference matching the PyTorch module semantics."""
    h = jnp.einsum("ncdhw,oc->nodhw", x_ncdhw, w1) + b1.reshape(1, -1, 1, 1, 1)
    h = jnp.maximum(h, 0.0)
    o = jnp.einsum("ncdhw,oc->nodhw", h, w2) + b2.reshape(1, -1, 1, 1, 1)
    return o


if __name__ == "__main__":
    # Small shapes consistent with the module (channels scaled down).
    N, C_in, C_hid, D, H, W = 2, 32, 16, 4, 8, 16   # S = D*H*W = 512

    key = jax.random.PRNGKey(0)
    k_x, k_w1, k_b1, k_w2, k_b2 = jax.random.split(key, 5)

    x = jax.random.normal(k_x, (N, C_in, D, H, W), dtype=jnp.float32)
    w1 = jax.random.normal(k_w1, (C_hid, C_in), dtype=jnp.float32) * 0.1
    b1 = jax.random.normal(k_b1, (C_hid,), dtype=jnp.float32) * 0.1
    w2 = jax.random.normal(k_w2, (1, C_hid), dtype=jnp.float32) * 0.1
    b2 = jax.random.normal(k_b2, (1,), dtype=jnp.float32) * 0.1

    ref = vqa_head_ref(x, w1, b1, w2, b2)

    # fp32 path: structural/indexing check (tolerance accounts for TPU
    # default-precision f32 matmul passes).
    out_f32 = vqa_head(x, w1, b1, w2, b2, compute_dtype=jnp.float32)
    out_f32 = jax.block_until_ready(out_f32)
    assert out_f32.shape == (N, 1, D, H, W), out_f32.shape
    assert jnp.allclose(out_f32, ref, atol=2e-3, rtol=2e-3), "fp32 mismatch"

    # bf16 path (default, perf config): loose tolerance vs fp32 reference.
    out_bf16 = vqa_head(x, w1, b1, w2, b2)
    out_bf16 = jax.block_until_ready(out_bf16)
    assert out_bf16.shape == (N, 1, D, H, W), out_bf16.shape
    assert jnp.allclose(out_bf16, ref, atol=5e-2, rtol=5e-2), "bf16 mismatch"

    print("KERNEL_OK")
</pallas_src>

<mosaic_0001>
module attributes {stable_mosaic.version = 11 : i64} {
  func.func @vqa_head_kernel(%arg0: i32, %arg1: i32, %arg2: memref<1x32x512xf32, #tpu.memory_space<vmem>>, %arg3: memref<16x32xf32, #tpu.memory_space<vmem>>, %arg4: memref<16x1xf32, #tpu.memory_space<vmem>>, %arg5: memref<1x16xf32, #tpu.memory_space<vmem>>, %arg6: memref<1x1xf32, #tpu.memory_space<vmem>>, %arg7: memref<1x1x512xf32, #tpu.memory_space<vmem>>) attributes {dimension_semantics = [#tpu.dimension_semantics<parallel>, #tpu.dimension_semantics<parallel>], iteration_bounds = array<i64: 2, 1>, scalar_prefetch = 0 : i64, scratch_operands = 0 : i64, tpu.core_type = #tpu.core_type<tc>, window_params = [{transform_indices = @transform_0, window_bounds = array<i64: 1, 32, 512>}, {pipeline_mode = #tpu.pipeline_mode<synchronous>, transform_indices = @transform_1, window_bounds = array<i64: 16, 32>}, {pipeline_mode = #tpu.pipeline_mode<synchronous>, transform_indices = @transform_2, window_bounds = array<i64: 16, 1>}, {pipeline_mode = #tpu.pipeline_mode<synchronous>, transform_indices = @transform_3, window_bounds = array<i64: 1, 16>}, {pipeline_mode = #tpu.pipeline_mode<synchronous>, transform_indices = @transform_4, window_bounds = array<i64: 1, 1>}, {transform_indices = @transform_5, window_bounds = array<i64: 1, 1, 512>}]} {
    %c0 = arith.constant 0 : index
    %c0_0 = arith.constant 0 : index
    %0 = vector.load %arg3[%c0, %c0_0] : memref<16x32xf32, #tpu.memory_space<vmem>>, vector<16x32xf32>
    %c0_1 = arith.constant 0 : index
    %c0_2 = arith.constant 0 : index
    %c0_3 = arith.constant 0 : index
    %1 = vector.load %arg2[%c0_1, %c0_2, %c0_3] : memref<1x32x512xf32, #tpu.memory_space<vmem>>, vector<1x32x512xf32>
    %2 = vector.shape_cast %1 : vector<1x32x512xf32> to vector<32x512xf32>
    %cst = arith.constant dense<0.000000e+00> : vector<16x512xf32>
    %3 = tpu.matmul %0, %2, %cst {dimension_numbers = #tpu.dot_dimension_numbers<[1], [0], [0], [1], [0, 0, 1, 1], [], []>} : vector<16x32xf32>, vector<32x512xf32>, vector<16x512xf32> -> vector<16x512xf32>
    %c0_4 = arith.constant 0 : index
    %c0_5 = arith.constant 0 : index
    %4 = vector.load %arg4[%c0_4, %c0_5] : memref<16x1xf32, #tpu.memory_space<vmem>>, vector<16x1xf32>
    %5 = vector.broadcast %4 : vector<16x1xf32> to vector<16x512xf32>
    %6 = arith.addf %3, %5 : vector<16x512xf32>
    %cst_6 = arith.constant 0.000000e+00 : f32
    %7 = vector.broadcast %cst_6 : f32 to vector<16x512xf32>
    %8 = arith.maximumf %6, %7 : vector<16x512xf32>
    %c0_7 = arith.constant 0 : index
    %c0_8 = arith.constant 0 : index
    %9 = vector.load %arg5[%c0_7, %c0_8] : memref<1x16xf32, #tpu.memory_space<vmem>>, vector<1x16xf32>
    %cst_9 = arith.constant dense<0.000000e+00> : vector<1x512xf32>
    %10 = tpu.matmul %9, %8, %cst_9 {dimension_numbers = #tpu.dot_dimension_numbers<[1], [0], [0], [1], [0, 0, 1, 1], [], []>} : vector<1x16xf32>, vector<16x512xf32>, vector<1x512xf32> -> vector<1x512xf32>
    %c0_10 = arith.constant 0 : index
    %c0_11 = arith.constant 0 : index
    %11 = vector.load %arg6[%c0_10, %c0_11] : memref<1x1xf32, #tpu.memory_space<vmem>>, vector<1x1xf32>
    %12 = vector.broadcast %11 : vector<1x1xf32> to vector<1x512xf32>
    %13 = arith.addf %10, %12 : vector<1x512xf32>
    %c0_12 = arith.constant 0 : index
    %c0_13 = arith.constant 0 : index
    %c0_14 = arith.constant 0 : index
    %14 = vector.load %arg7[%c0_12, %c0_13, %c0_14] : memref<1x1x512xf32, #tpu.memory_space<vmem>>, vector<1x1x512xf32>
    %15 = vector.shape_cast %14 : vector<1x1x512xf32> to vector<1x512xf32>
    %16 = vector.shape_cast %13 : vector<1x512xf32> to vector<1x1x512xf32>
    tpu.vector_store %arg7[%c0_12, %c0_13, %c0_14], %16 {strides = array<i32>} : memref<1x1x512xf32, #tpu.memory_space<vmem>>, vector<1x1x512xf32>,
    return
  }
  func.func @transform_0(%arg0: i32, %arg1: i32) -> (i32, i32, i32) {
    %c0_i32 = arith.constant 0 : i32
    %c0_i32_0 = arith.constant 0 : i32
    return %arg0, %c0_i32, %arg1 : i32, i32, i32
  }
  func.func @transform_1(%arg0: i32, %arg1: i32) -> (i32, i32) {
    %c0_i32 = arith.constant 0 : i32
    %c0_i32_0 = arith.constant 0 : i32
    %c0_i32_1 = arith.constant 0 : i32
    return %c0_i32, %c0_i32_0 : i32, i32
  }
  func.func @transform_2(%arg0: i32, %arg1: i32) -> (i32, i32) {
    %c0_i32 = arith.constant 0 : i32
    %c0_i32_0 = arith.constant 0 : i32
    %c0_i32_1 = arith.constant 0 : i32
    return %c0_i32, %c0_i32_0 : i32, i32
  }
  func.func @transform_3(%arg0: i32, %arg1: i32) -> (i32, i32) {
    %c0_i32 = arith.constant 0 : i32
    %c0_i32_0 = arith.constant 0 : i32
    %c0_i32_1 = arith.constant 0 : i32
    return %c0_i32, %c0_i32_0 : i32, i32
  }
  func.func @transform_4(%arg0: i32, %arg1: i32) -> (i32, i32) {
    %c0_i32 = arith.constant 0 : i32
    %c0_i32_0 = arith.constant 0 : i32
    %c0_i32_1 = arith.constant 0 : i32
    return %c0_i32, %c0_i32_0 : i32, i32
  }
  func.func @transform_5(%arg0: i32, %arg1: i32) -> (i32, i32, i32) {
    %c0_i32 = arith.constant 0 : i32
    %c0_i32_0 = arith.constant 0 : i32
    return %arg0, %c0_i32, %arg1 : i32, i32, i32
  }
}

</mosaic_0001>

<llo_original>
// kernel: tpu_custom_call.1
$region0: #{tpu_custom_call.1}
  #allocation0 [shape = 'u32[]', space=smem, size = 0x4, offset = 0x4, fixed_abs, tag = 'smem constant byte address 0x4 - core index']
  #allocation1 [shape = 'u32[144,128]{1,0:T(1,128)}', space=vmem, size = 0x12000, scoped, tag = 'internal scratch']
  #allocation2 [shape = 'f32[1,1]{1,0:T(1,128)S(1)}', space=vmem, size = 0x200, scoped, tag = 'scoped memory for tpu_custom_call.1']
  %s0 = inlined_call_operand.hbm [shape: f32[2,32,512], index: 0, kind: input, shape index: {}]
  %s1 = inlined_call_operand.vmem [shape: f32[16,32], index: 1, kind: input, shape index: {}]
  %s2 = inlined_call_operand.vmem [shape: f32[16,1], index: 2, kind: input, shape index: {}]
  %s3 = inlined_call_operand.vmem [shape: f32[1,16], index: 3, kind: input, shape index: {}]
  %s4 = inlined_call_operand.<no memory space> [shape: f32[1,1], index: 4, kind: input, shape index: {}]
  %s5 = inlined_call_operand.hbm [shape: f32[2,1,512], index: 5, kind: output, shape index: {}]
  %s6 = sld [smem:[#allocation0]]
  $region57: #{tpu_custom_call.1} parent=0
    _
  %s8 = ssub.s32 1, %s6
  %s9 = scalar_select 0, %s8, %s6
  %v10 = vstv %s4
  %11 = vst [vmem:[#allocation2] sm:$0x1] %v10
  $region1: #{tpu_custom_call.1} parent=0
    #allocation3 [shape = 'u8[131072]{0}', space=vmem, size = 0x20000, scoped, tag = 'input window, operand 0']
    #allocation4 [shape = 's32[2]{0}', space=sflag, size = 0x8, scoped, tag = 'scoped memory for tpu_custom_call.1']
    #allocation5 [shape = 's32[2]{0}', space=sflag, size = 0x8, scoped, tag = 'scoped memory for tpu_custom_call.1']
    #allocation6 [shape = 'u8[4096]{0}', space=vmem, size = 0x1000, scoped, tag = 'output window, operand 0']
    %12 = vsyncpa [#allocation4], 0
    %s13 = scalar_lea.sflag [#allocation4], 1
    %14 = vsyncpa %s13, 0
    %15 = vsyncpa [#allocation5], 0
    %s16 = scalar_lea.sflag [#allocation5], 1
    %17 = vsyncpa %s16, 0
    loop: start=0, step=1, limit=4
    $region2: #{tpu_custom_call.1} parent=1 // loop_pre_header
      _
    $region3: #{tpu_custom_call.1} parent=1 // loop_header
      %s19 = sphi 0, %s23
      %p20 = scmp.ge.s32.totalorder %s19, 4
      %s26 = sphi 0, %s38
      %s27 = sphi 0, %s34
      %s28 = sphi 0, %s26
      %s29 = sphi 0, %s27
      %s30 = sphi 0, %s28
      %s31 = sphi 0, %s29
      %s43 = sphi 0, %s45
      %s46 = sphi 0, %s43
      %s47 = sphi 0, %s46
      %s63 = sphi 0, %s47
      %s67 = sphi 0, %s67
      %s69 = sphi 0, %s67
      %s70 = sphi 0, %s69
      %s84 = sphi 0, %s70
      %s88 = sphi 0, %s88
      %s90 = sphi 0, %s88
      %s91 = sphi 0, %s90
      %s105 = sphi 0, %s91
      %s109 = sphi 0, %s109
      %s111 = sphi 0, %s109
      %s112 = sphi 0, %s111
      %s126 = sphi 0, %s112
      %s130 = sphi 0, %s130
      %s132 = sphi 0, %s130
      %s133 = sphi 0, %s132
      %s147 = sphi 0, %s133
      %s155 = sphi 0, %s157
      %s158 = sphi 0, %s155
      %s159 = sphi 0, %s158
      %s175 = sphi 0, %s159
    $region4: #{tpu_custom_call.1} parent=1 // loop_header_branch
      %22 = sbr.rel (%p20) target = $region8
    $region5: #{tpu_custom_call.1} parent=1 // loop_body
      %s24 = ssub.s32 %s19, 1
      %s25 = ssub.s32 %s19, 2
      %s32 = sadd.s32 1, %s27
      %p33 = scmp.ge.s32.totalorder %s32, 1
      %s34 = scalar_select %p33, 0, %s32
      %s35 = sadd.s32 1, %s26
      %s36 = scalar_select %p33, %s35, %s26
      %p37 = scmp.ge.s32.totalorder %s36, 2
      %s38 = scalar_select %p37, 0, %s36
      %s39 = ssub.s32 %s26, %s38
      %s40 = ssub.s32 %s27, %s34
      %s41 = sor.u32 %s39, %s40
      %p42 = scmp.eq.s32.totalorder %s41, 0
      %s44 = sadd.s32 %s43, 1
      %s45 = scalar_select %p42, %s43, %s44
      %p48 = pneg %p42
      %p49 = scmp.eq.s32.totalorder %s19, 1
      %p50 = por %p48, %p49
      %p51 = scmp.ne.s32.totalorder %s43, %s46
      %p52 = scmp.eq.s32.totalorder %s19, 0
      %p53 = por %p51, %p52
      %p54 = scmp.ne.s32.totalorder %s43, %s46
      %p55 = scmp.eq.s32.totalorder %s24, 1
      %p56 = por %p54, %p55
      %p57 = scmp.ne.s32.totalorder %s46, %s47
      %p58 = scmp.eq.s32.totalorder %s24, 0
      %p59 = por %p57, %p58
      %p60 = scmp.ne.s32.totalorder %s46, %s47
      %p61 = scmp.eq.s32.totalorder %s25, 1
      %p62 = por %p60, %p61
      %p64 = scmp.ne.s32.totalorder %s47, %s63
      %p65 = scmp.eq.s32.totalorder %s25, 0
      %p66 = por %p64, %p65
      %s68 = sadd.s32 %s67, 1
      %p71 = scmp.eq.s32.totalorder %s19, 1
      %p72 = scmp.ne.s32.totalorder %s67, %s69
      %p73 = scmp.eq.s32.totalorder %s19, 0
      %p74 = por %p72, %p73
      %p75 = scmp.ne.s32.totalorder %s67, %s69
      %p76 = scmp.eq.s32.totalorder %s24, 1
      %p77 = por %p75, %p76
      %p78 = scmp.ne.s32.totalorder %s69, %s70
      %p79 = scmp.eq.s32.totalorder %s24, 0
      %p80 = por %p78, %p79
      %p81 = scmp.ne.s32.totalorder %s69, %s70
      %p82 = scmp.eq.s32.totalorder %s25, 1
      %p83 = por %p81, %p82
      %p85 = scmp.ne.s32.totalorder %s70, %s84
      %p86 = scmp.eq.s32.totalorder %s25, 0
      %p87 = por %p85, %p86
      %s89 = sadd.s32 %s88, 1
      %p92 = scmp.eq.s32.totalorder %s19, 1
      %p93 = scmp.ne.s32.totalorder %s88, %s90
      %p94 = scmp.eq.s32.totalorder %s19, 0
      %p95 = por %p93, %p94
      %p96 = scmp.ne.s32.totalorder %s88, %s90
      %p97 = scmp.eq.s32.totalorder %s24, 1
      %p98 = por %p96, %p97
      %p99 = scmp.ne.s32.totalorder %s90, %s91
      %p100 = scmp.eq.s32.totalorder %s24, 0
      %p101 = por %p99, %p100
      %p102 = scmp.ne.s32.totalorder %s90, %s91
      %p103 = scmp.eq.s32.totalorder %s25, 1
      %p104 = por %p102, %p103
      %p106 = scmp.ne.s32.totalorder %s91, %s105
      %p107 = scmp.eq.s32.totalorder %s25, 0
      %p108 = por %p106, %p107
      %s110 = sadd.s32 %s109, 1
      %p113 = scmp.eq.s32.totalorder %s19, 1
      %p114 = scmp.ne.s32.totalorder %s109, %s111
      %p115 = scmp.eq.s32.totalorder %s19, 0
      %p116 = por %p114, %p115
      %p117 = scmp.ne.s32.totalorder %s109, %s111
      %p118 = scmp.eq.s32.totalorder %s24, 1
      %p119 = por %p117, %p118
      %p120 = scmp.ne.s32.totalorder %s111, %s112
      %p121 = scmp.eq.s32.totalorder %s24, 0
      %p122 = por %p120, %p121
      %p123 = scmp.ne.s32.totalorder %s111, %s112
      %p124 = scmp.eq.s32.totalorder %s25, 1
      %p125 = por %p123, %p124
      %p127 = scmp.ne.s32.totalorder %s112, %s126
      %p128 = scmp.eq.s32.totalorder %s25, 0
      %p129 = por %p127, %p128
      %s131 = sadd.s32 %s130, 1
      %p134 = scmp.eq.s32.totalorder %s19, 1
      %p135 = scmp.ne.s32.totalorder %s130, %s132
      %p136 = scmp.eq.s32.totalorder %s19, 0
      %p137 = por %p135, %p136
      %p138 = scmp.ne.s32.totalorder %s130, %s132
      %p139 = scmp.eq.s32.totalorder %s24, 1
      %p140 = por %p138, %p139
      %p141 = scmp.ne.s32.totalorder %s132, %s133
      %p142 = scmp.eq.s32.totalorder %s24, 0
      %p143 = por %p141, %p142
      %p144 = scmp.ne.s32.totalorder %s132, %s133
      %p145 = scmp.eq.s32.totalorder %s25, 1
      %p146 = por %p144, %p145
      %p148 = scmp.ne.s32.totalorder %s133, %s147
      %p149 = scmp.eq.s32.totalorder %s25, 0
      %p150 = por %p148, %p149
      %s151 = ssub.s32 %s26, %s38
      %s152 = ssub.s32 %s27, %s34
      %s153 = sor.u32 %s151, %s152
      %p154 = scmp.eq.s32.totalorder %s153, 0
      %s156 = sadd.s32 %s155, 1
      %s157 = scalar_select %p154, %s155, %s156
      %p160 = pneg %p154
      %p161 = scmp.eq.s32.totalorder %s19, 1
      %p162 = por %p160, %p161
      %p163 = scmp.ne.s32.totalorder %s155, %s158
      %p164 = scmp.eq.s32.totalorder %s19, 0
      %p165 = por %p163, %p164
      %p166 = scmp.ne.s32.totalorder %s155, %s158
      %p167 = scmp.eq.s32.totalorder %s24, 1
      %p168 = por %p166, %p167
      %p169 = scmp.ne.s32.totalorder %s158, %s159
      %p170 = scmp.eq.s32.totalorder %s24, 0
      %p171 = por %p169, %p170
      %p172 = scmp.ne.s32.totalorder %s158, %s159
      %p173 = scmp.eq.s32.totalorder %s25, 1
      %p174 = por %p172, %p173
      %p176 = scmp.ne.s32.totalorder %s159, %s175
      %p177 = scmp.eq.s32.totalorder %s25, 0
      %p178 = por %p176, %p177
      %p179 = scmp.le.s32.totalorder 1, %s19
      %p180 = scmp.lt.s32.totalorder %s19, 3
      %p181 = pnand %p179, %p180
      %p182 = pneg %p181
      // Predicated region
      $region9: #{tpu_custom_call.1} parent=5 // pred_check
        _
      $region10: #{tpu_custom_call.1} parent=5 // pred_check_branch
        %184 = sbr.rel (%p181) target = $region12
      $region11: #{tpu_custom_call.1} parent=5 // pred_region
        %s185 = ssub.s32 %s19, 1
        // Predicated region
        $region13: #{tpu_custom_call.1} parent=11 // pred_check
          %p186 = pneg %p80
        $region14: #{tpu_custom_call.1} parent=11 // pred_check_branch
          %188 = sbr.rel (%p186) target = $region16
        $region15: #{tpu_custom_call.1} parent=11 // pred_region
          _
        $region16: #{tpu_custom_call.1} parent=11 // pred_fallthru
          _
        // Predicated region
        $region17: #{tpu_custom_call.1} parent=11 // pred_check
          %p189 = pneg %p101
        $region18: #{tpu_custom_call.1} parent=11 // pred_check_branch
          %191 = sbr.rel (%p189) target = $region20
        $region19: #{tpu_custom_call.1} parent=11 // pred_region
          _
        $region20: #{tpu_custom_call.1} parent=11 // pred_fallthru
          _
        // Predicated region
        $region21: #{tpu_custom_call.1} parent=11 // pred_check
          %p192 = pneg %p122
        $region22: #{tpu_custom_call.1} parent=11 // pred_check_branch
          %194 = sbr.rel (%p192) target = $region24
        $region23: #{tpu_custom_call.1} parent=11 // pred_region
          _
        $region24: #{tpu_custom_call.1} parent=11 // pred_fallthru
          _
        // Predicated region
        $region25: #{tpu_custom_call.1} parent=11 // pred_check
          %p195 = pneg %p143
        $region26: #{tpu_custom_call.1} parent=11 // pred_check_branch
          %197 = sbr.rel (%p195) target = $region28
        $region27: #{tpu_custom_call.1} parent=11 // pred_region
          _
        $region28: #{tpu_custom_call.1} parent=11 // pred_fallthru
          _
      $region12: #{tpu_custom_call.1} parent=5 // pred_fallthru
        _
      %p198 = scmp.lt.s32.totalorder %s19, 2
      // Predicated region
      $region29: #{tpu_custom_call.1} parent=5 // pred_check
        %p199 = pneg %p198
      $region30: #{tpu_custom_call.1} parent=5 // pred_check_branch
        %201 = sbr.rel (%p199) target = $region32
      $region31: #{tpu_custom_call.1} parent=5 // pred_region
        // Predicated region
        $region33: #{tpu_custom_call.1} parent=31 // pred_check
          %p202 = pneg %p53
        $region34: #{tpu_custom_call.1} parent=31 // pred_check_branch
          %204 = sbr.rel (%p202) target = $region36
        $region35: #{tpu_custom_call.1} parent=31 // pred_region
          %s205 = sand.u32 %s43, 1
          %s206 = scalar_lea.sflag [#allocation4], %s205
          %s207 = sand.u32 %s43, 1
          %s208 = smul.addr %s207, 128
          %s209 = scalar_lea.vmem [#allocation3], %s208
          %s210 = smul.u32 4, %s27
          %s212 = ssub.s32 2048, 2048
          %213 = vsyncadd %s206, %s212
          %s214 = smul.addr %s26, 16
          %s215 = sadd.s32 %s210, %s214
          %s216 = smul.addr %s215, 128
          %s217 = scalar_lea.hbm %s0, %s216
          %s218 = sshll.u32 %s209, 4
          %s219 = int_to_ptr.vmem [resolvable:$true] %s218
          %224 = dma.hbm_to_vmem [thread:$0]  %s217, 2048, %s219, %s206, 512, 512, 32
        $region36: #{tpu_custom_call.1} parent=31 // pred_fallthru
          _
      $region32: #{tpu_custom_call.1} parent=5 // pred_fallthru
        _
      %p225 = scmp.le.s32.totalorder 1, %s19
      %p226 = scmp.lt.s32.totalorder %s19, 3
      %p227 = pnand %p225, %p226
      %p228 = pneg %p227
      // Predicated region
      $region37: #{tpu_custom_call.1} parent=5 // pred_check
        _
      $region38: #{tpu_custom_call.1} parent=5 // pred_check_branch
        %230 = sbr.rel (%p227) target = $region40
      $region39: #{tpu_custom_call.1} parent=5 // pred_region
        %s231 = ssub.s32 %s19, 1
        %s232 = sand.u32 %s46, 1
        %s233 = scalar_lea.sflag [#allocation4], %s232
        %s234 = sand.u32 %s46, 1
        %s235 = smul.addr %s234, 128
        %s236 = scalar_lea.vmem [#allocation3], %s235
        // Predicated region
        $region41: #{tpu_custom_call.1} parent=39 // pred_check
          %p237 = pneg %p59
        $region42: #{tpu_custom_call.1} parent=39 // pred_check_branch
          %239 = sbr.rel (%p237) target = $region44
        $region43: #{tpu_custom_call.1} parent=39 // pred_region
          %240 = dma.done %s233, 2048
        $region44: #{tpu_custom_call.1} parent=39 // pred_fallthru
          _
        %s241 = sand.u32 %s46, 1
        %s242 = scalar_lea.sflag [#allocation4], %s241
        %s243 = sand.u32 %s46, 1
        %s244 = smul.addr %s243, 128
        %s245 = scalar_lea.vmem [#allocation3], %s244
        %p246 = pneg %p59
        %p247 = pneg %p56
        %p248 = pneg %p80
        %p249 = pneg %p77
        %p250 = pneg %p101
        %p251 = pneg %p98
        %p252 = pneg %p122
        %p253 = pneg %p119
        %p254 = pneg %p143
        %p255 = pneg %p140
        %p256 = pneg %p171
        %p257 = pneg %p168
        %s258 = sand.u32 %s158, 1
        %s259 = scalar_lea.sflag [#allocation5], %s258
        %s260 = sand.u32 %s158, 1
        %s261 = smul.addr %s260, 4
        %s262 = scalar_lea.vmem [#allocation6], %s261
        %s263 = smul.u32 4, %s29
        %s264 = smul.u32 4, %s29
        %v265 = vld [vmem:[%s1] sm:$0xff]
        %v266 = vld [vmem:[%s1 + $0x8] sm:$0xff]
        %v267 = vld [vmem:[%s236] sm:$0xff]
        %v268 = vld [vmem:[%s236 + $0x8] sm:$0xff]
        %v269 = vld [vmem:[%s236 + $0x10] sm:$0xff]
        %v270 = vld [vmem:[%s236 + $0x18] sm:$0xff]
        %v271 = vld [vmem:[%s236 + $0x20] sm:$0xff]
        %v272 = vld [vmem:[%s236 + $0x28] sm:$0xff]
        %v273 = vld [vmem:[%s236 + $0x30] sm:$0xff]
        %v274 = vld [vmem:[%s236 + $0x38] sm:$0xff]
        %v275 = vld [vmem:[%s236 + $0x40] sm:$0xff]
        %v276 = vld [vmem:[%s236 + $0x48] sm:$0xff]
        %v277 = vld [vmem:[%s236 + $0x50] sm:$0xff]
        %v278 = vld [vmem:[%s236 + $0x58] sm:$0xff]
        %v279 = vld [vmem:[%s236 + $0x60] sm:$0xff]
        %v280 = vld [vmem:[%s236 + $0x68] sm:$0xff]
        %v281 = vld [vmem:[%s236 + $0x70] sm:$0xff]
        %v282 = vld [vmem:[%s236 + $0x78] sm:$0xff]
        %v283 = vld [vmem:[%s2] sm:$0xff]
        %v284 = vld [vmem:[%s2 + $0x8] sm:$0xff]
        %286 = vset.pattern.permute.xlu0 0
        %287 = vperm.xlu0 %286, %v283
        %v288 = vpop.permute.xlu0 %287
        %291 = vset.pattern.permute.xlu0 0
        %292 = vperm.xlu0 %291, %v284
        %v293 = vpop.permute.xlu0 %292
        %vm295 = vcmask 261120
        %v297 = vsel %vm295, %v265, 0
        %v300 = vsel %vm295, %v266, 0
        %302 = vmatprep.subr.mxu0 0.0
        %303 = vmatpush1.msra.mxu0 0.0
        %304 = vmatprep.subr.mxu0 0.0
        %305 = vmatpush1.msra.mxu0 0.0
        %306 = vmatprep.subr.mxu0 0.0
        %307 = vmatpush1.msra.mxu0 0.0
        %308 = vmatprep.subr.mxu0 0.0
        %309 = vmatpush1.msra.mxu0 0.0
        %310 = vmatprep.subr.mxu0 0.0
        %311 = vmatpush1.msra.mxu0 0.0
        %312 = vmatprep.subr.mxu0 0.0
        %313 = vmatpush1.msra.mxu0 0.0
        %314 = vmatprep.subr.mxu0 0.0
        %315 = vmatpush1.msra.mxu0 0.0
        %316 = vmatprep.subr.mxu0 0.0
        %317 = vmatpush1.msra.mxu0 0.0
        %318 = vmatprep.subr.mxu0 0.0
        %319 = vmatpush1.msra.mxu0 0.0
        %320 = vmatprep.subr.mxu0 0.0
        %321 = vmatpush1.msra.mxu0 0.0
        %322 = vmatprep.subr.mxu0 0.0
        %323 = vmatpush1.msra.mxu0 0.0
        %324 = vmatprep.subr.mxu0 0.0
        %325 = vmatpush1.msra.mxu0 0.0
        %326 = vmatprep.subr.mxu0 %v280
        %327 = vmatpush1.msra.mxu0 %v279
        %328 = vmatprep.subr.mxu0 %v276
        %329 = vmatpush1.msra.mxu0 %v275
        %330 = vmatprep.subr.mxu0 %v272
        %331 = vmatpush1.msra.mxu0 %v271
        %332 = vmatprep.subr.mxu0 %v268
        %333 = vmatpush1.msra.mxu0 %v267
        %334 = vmatprep.subr.mxu0 0.0
        %335 = vmatpush2.msra.mxu0 0.0
        %336 = vmatprep.subr.mxu0 0.0
        %337 = vmatpush2.msra.mxu0 0.0
        %338 = vmatprep.subr.mxu0 0.0
        %339 = vmatpush2.msra.mxu0 0.0
        %340 = vmatprep.subr.mxu0 0.0
        %341 = vmatpush2.msra.mxu0 0.0
        %342 = vmatprep.subr.mxu0 0.0
        %343 = vmatpush2.msra.mxu0 0.0
        %344 = vmatprep.subr.mxu0 0.0
        %345 = vmatpush2.msra.mxu0 0.0
        %346 = vmatprep.subr.mxu0 0.0
        %347 = vmatpush2.msra.mxu0 0.0
        %348 = vmatprep.subr.mxu0 0.0
        %349 = vmatpush2.msra.mxu0 0.0
        %350 = vmatprep.subr.mxu0 0.0
        %351 = vmatpush2.msra.mxu0 0.0
        %352 = vmatprep.subr.mxu0 0.0
        %353 = vmatpush2.msra.mxu0 0.0
        %354 = vmatprep.subr.mxu0 0.0
        %355 = vmatpush2.msra.mxu0 0.0
        %356 = vmatprep.subr.mxu0 0.0
        %357 = vmatpush2.msra.mxu0 0.0
        %358 = vmatprep.subr.mxu0 0.0
        %359 = vmatpush2.msra.mxu0 0.0
        %360 = vmatprep.subr.mxu0 0.0
        %361 = vmatpush2.msra.mxu0 0.0
        %362 = vmatprep.subr.mxu0 0.0
        %363 = vmatpush2.msra.mxu0 0.0
        %364 = vmatprep.subr.mxu0 0.0
        %365 = vmatpush2.msra.mxu0 0.0
        %366 = vmatprep.mubr.f32.mxu0 0.0
        %367 = vmatmul.mubr.f32.gmra.mxu0 %v297
        %v368 = vpop.f32.mrf.mxu0
        %v369 = vadd.f32 %v288, %v368
        %v370 = vpop.f32.mrf.mxu0
        %v371 = vadd.f32 %v288, %v370
        %372 = vmatprep.mubr.f32.mxu0 0.0
        %373 = vmatmul.mubr.f32.gmra.mxu0 %v300
        %v374 = vpop.f32.mrf.mxu0
        %v375 = vadd.f32 %v293, %v374
        %v376 = vpop.f32.mrf.mxu0
        %v377 = vadd.f32 %v293, %v376
        %378 = vdwg.mxu0
        %379 = vmatprep.subr.mxu0 0.0
        %380 = vmatpush1.msra.mxu0 0.0
        %381 = vmatprep.subr.mxu0 0.0
        %382 = vmatpush1.msra.mxu0 0.0
        %383 = vmatprep.subr.mxu0 0.0
        %384 = vmatpush1.msra.mxu0 0.0
        %385 = vmatprep.subr.mxu0 0.0
        %386 = vmatpush1.msra.mxu0 0.0
        %387 = vmatprep.subr.mxu0 0.0
        %388 = vmatpush1.msra.mxu0 0.0
        %389 = vmatprep.subr.mxu0 0.0
        %390 = vmatpush1.msra.mxu0 0.0
        %391 = vmatprep.subr.mxu0 0.0
        %392 = vmatpush1.msra.mxu0 0.0
        %393 = vmatprep.subr.mxu0 0.0
        %394 = vmatpush1.msra.mxu0 0.0
        %395 = vmatprep.subr.mxu0 0.0
        %396 = vmatpush1.msra.mxu0 0.0
        %397 = vmatprep.subr.mxu0 0.0
        %398 = vmatpush1.msra.mxu0 0.0
        %399 = vmatprep.subr.mxu0 0.0
        %400 = vmatpush1.msra.mxu0 0.0
        %401 = vmatprep.subr.mxu0 0.0
        %402 = vmatpush1.msra.mxu0 0.0
        %403 = vmatprep.subr.mxu0 %v282
        %404 = vmatpush1.msra.mxu0 %v281
        %405 = vmatprep.subr.mxu0 %v278
        %406 = vmatpush1.msra.mxu0 %v277
        %407 = vmatprep.subr.mxu0 %v274
        %408 = vmatpush1.msra.mxu0 %v273
        %409 = vmatprep.subr.mxu0 %v270
        %410 = vmatpush1.msra.mxu0 %v269
        %411 = vmatprep.subr.mxu0 0.0
        %412 = vmatpush2.msra.mxu0 0.0
        %413 = vmatprep.subr.mxu0 0.0
        %414 = vmatpush2.msra.mxu0 0.0
        %415 = vmatprep.subr.mxu0 0.0
        %416 = vmatpush2.msra.mxu0 0.0
        %417 = vmatprep.subr.mxu0 0.0
        %418 = vmatpush2.msra.mxu0 0.0
        %419 = vmatprep.subr.mxu0 0.0
        %420 = vmatpush2.msra.mxu0 0.0
        %421 = vmatprep.subr.mxu0 0.0
        %422 = vmatpush2.msra.mxu0 0.0
        %423 = vmatprep.subr.mxu0 0.0
        %424 = vmatpush2.msra.mxu0 0.0
        %425 = vmatprep.subr.mxu0 0.0
        %426 = vmatpush2.msra.mxu0 0.0
        %427 = vmatprep.subr.mxu0 0.0
        %428 = vmatpush2.msra.mxu0 0.0
        %429 = vmatprep.subr.mxu0 0.0
        %430 = vmatpush2.msra.mxu0 0.0
        %431 = vmatprep.subr.mxu0 0.0
        %432 = vmatpush2.msra.mxu0 0.0
        %433 = vmatprep.subr.mxu0 0.0
        %434 = vmatpush2.msra.mxu0 0.0
        %435 = vmatprep.subr.mxu0 0.0
        %436 = vmatpush2.msra.mxu0 0.0
        %437 = vmatprep.subr.mxu0 0.0
        %438 = vmatpush2.msra.mxu0 0.0
        %439 = vmatprep.subr.mxu0 0.0
        %440 = vmatpush2.msra.mxu0 0.0
        %441 = vmatprep.subr.mxu0 0.0
        %442 = vmatpush2.msra.mxu0 0.0
        %443 = vmatprep.mubr.f32.mxu0 0.0
        %444 = vmatmul.mubr.f32.gmra.mxu0 %v297
        %v445 = vpop.f32.mrf.mxu0
        %v446 = vadd.f32 %v288, %v445
        %v447 = vpop.f32.mrf.mxu0
        %v448 = vadd.f32 %v288, %v447
        %449 = vmatprep.mubr.f32.mxu0 0.0
        %450 = vmatmul.mubr.f32.gmra.mxu0 %v300
        %v451 = vpop.f32.mrf.mxu0
        %v452 = vadd.f32 %v293, %v451
        %v453 = vpop.f32.mrf.mxu0
        %v454 = vadd.f32 %v293, %v453
        %455 = vdwg.mxu0
        %v456 = vmax.f32 %v369, 0.0
        %v457 = vmax.f32 %v371, 0.0
        %v458 = vmax.f32 %v446, 0.0
        %v459 = vmax.f32 %v448, 0.0
        %v460 = vmax.f32 %v375, 0.0
        %v461 = vmax.f32 %v377, 0.0
        %v462 = vmax.f32 %v452, 0.0
        %v463 = vmax.f32 %v454, 0.0
        %v464 = vld [vmem:[%s3] sm:$0x1]
        %v465 = vld [vmem:[#allocation2] sm:$0x1]
        %467 = vset.pattern.permute.xlu0 0
        %468 = vperm.xlu0 %467, %v465
        %v469 = vpop.permute.xlu0 %468
        %v471 = vlaneseq
        %v472 = vshrl.u32 %v471, 7
        %v473 = vsub.s32 0, %v472
        %v474 = vrot.slane %v469, %v473
        %vm475 = vcmask 130048
        %v477 = vsel %vm475, %v464, 0
        %479 = vmatprep.subr.mxu0 0.0
        %480 = vmatpush1.msra.mxu0 0.0
        %481 = vmatprep.subr.mxu0 0.0
        %482 = vmatpush1.msra.mxu0 0.0
        %483 = vmatprep.subr.mxu0 0.0
        %484 = vmatpush1.msra.mxu0 0.0
        %485 = vmatprep.subr.mxu0 0.0
        %486 = vmatpush1.msra.mxu0 0.0
        %487 = vmatprep.subr.mxu0 0.0
        %488 = vmatpush1.msra.mxu0 0.0
        %489 = vmatprep.subr.mxu0 0.0
        %490 = vmatpush1.msra.mxu0 0.0
        %491 = vmatprep.subr.mxu0 0.0
        %492 = vmatpush1.msra.mxu0 0.0
        %493 = vmatprep.subr.mxu0 0.0
        %494 = vmatpush1.msra.mxu0 0.0
        %495 = vmatprep.subr.mxu0 0.0
        %496 = vmatpush1.msra.mxu0 0.0
        %497 = vmatprep.subr.mxu0 0.0
        %498 = vmatpush1.msra.mxu0 0.0
        %499 = vmatprep.subr.mxu0 0.0
        %500 = vmatpush1.msra.mxu0 0.0
        %501 = vmatprep.subr.mxu0 0.0
        %502 = vmatpush1.msra.mxu0 0.0
        %503 = vmatprep.subr.mxu0 0.0
        %504 = vmatpush1.msra.mxu0 0.0
        %505 = vmatprep.subr.mxu0 0.0
        %506 = vmatpush1.msra.mxu0 0.0
        %507 = vmatprep.subr.mxu0 %v461
        %508 = vmatpush1.msra.mxu0 %v460
        %509 = vmatprep.subr.mxu0 %v457
        %510 = vmatpush1.msra.mxu0 %v456
        %511 = vmatprep.subr.mxu0 0.0
        %512 = vmatpush2.msra.mxu0 0.0
        %513 = vmatprep.subr.mxu0 0.0
        %514 = vmatpush2.msra.mxu0 0.0
        %515 = vmatprep.subr.mxu0 0.0
        %516 = vmatpush2.msra.mxu0 0.0
        %517 = vmatprep.subr.mxu0 0.0
        %518 = vmatpush2.msra.mxu0 0.0
        %519 = vmatprep.subr.mxu0 0.0
        %520 = vmatpush2.msra.mxu0 0.0
        %521 = vmatprep.subr.mxu0 0.0
        %522 = vmatpush2.msra.mxu0 0.0
        %523 = vmatprep.subr.mxu0 0.0
        %524 = vmatpush2.msra.mxu0 0.0
        %525 = vmatprep.subr.mxu0 0.0
        %526 = vmatpush2.msra.mxu0 0.0
        %527 = vmatprep.subr.mxu0 0.0
        %528 = vmatpush2.msra.mxu0 0.0
        %529 = vmatprep.subr.mxu0 0.0
        %530 = vmatpush2.msra.mxu0 0.0
        %531 = vmatprep.subr.mxu0 0.0
        %532 = vmatpush2.msra.mxu0 0.0
        %533 = vmatprep.subr.mxu0 0.0
        %534 = vmatpush2.msra.mxu0 0.0
        %535 = vmatprep.subr.mxu0 0.0
        %536 = vmatpush2.msra.mxu0 0.0
        %537 = vmatprep.subr.mxu0 0.0
        %538 = vmatpush2.msra.mxu0 0.0
        %539 = vmatprep.subr.mxu0 0.0
        %540 = vmatpush2.msra.mxu0 0.0
        %541 = vmatprep.subr.mxu0 0.0
        %542 = vmatpush2.msra.mxu0 0.0
        %543 = vmatprep.mubr.f32.mxu0 0.0
        %544 = vmatmul.mubr.f32.gmra.mxu0 %v477
        %v545 = vpop.f32.mrf.mxu0
        %v546 = vadd.f32 %v474, %v545
        %v547 = vpop.f32.mrf.mxu0
        %v548 = vadd.f32 %v474, %v547
        %549 = vdwg.mxu0
        %550 = vmatprep.subr.mxu0 0.0
        %551 = vmatpush1.msra.mxu0 0.0
        %552 = vmatprep.subr.mxu0 0.0
        %553 = vmatpush1.msra.mxu0 0.0
        %554 = vmatprep.subr.mxu0 0.0
        %555 = vmatpush1.msra.mxu0 0.0
        %556 = vmatprep.subr.mxu0 0.0
        %557 = vmatpush1.msra.mxu0 0.0
        %558 = vmatprep.subr.mxu0 0.0
        %559 = vmatpush1.msra.mxu0 0.0
        %560 = vmatprep.subr.mxu0 0.0
        %561 = vmatpush1.msra.mxu0 0.0
        %562 = vmatprep.subr.mxu0 0.0
        %563 = vmatpush1.msra.mxu0 0.0
        %564 = vmatprep.subr.mxu0 0.0
        %565 = vmatpush1.msra.mxu0 0.0
        %566 = vmatprep.subr.mxu0 0.0
        %567 = vmatpush1.msra.mxu0 0.0
        %568 = vmatprep.subr.mxu0 0.0
        %569 = vmatpush1.msra.mxu0 0.0
        %570 = vmatprep.subr.mxu0 0.0
        %571 = vmatpush1.msra.mxu0 0.0
        %572 = vmatprep.subr.mxu0 0.0
        %573 = vmatpush1.msra.mxu0 0.0
        %574 = vmatprep.subr.mxu0 0.0
        %575 = vmatpush1.msra.mxu0 0.0
        %576 = vmatprep.subr.mxu0 0.0
        %577 = vmatpush1.msra.mxu0 0.0
        %578 = vmatprep.subr.mxu0 %v463
        %579 = vmatpush1.msra.mxu0 %v462
        %580 = vmatprep.subr.mxu0 %v459
        %581 = vmatpush1.msra.mxu0 %v458
        %582 = vmatprep.subr.mxu0 0.0
        %583 = vmatpush2.msra.mxu0 0.0
        %584 = vmatprep.subr.mxu0 0.0
        %585 = vmatpush2.msra.mxu0 0.0
        %586 = vmatprep.subr.mxu0 0.0
        %587 = vmatpush2.msra.mxu0 0.0
        %588 = vmatprep.subr.mxu0 0.0
        %589 = vmatpush2.msra.mxu0 0.0
        %590 = vmatprep.subr.mxu0 0.0
        %591 = vmatpush2.msra.mxu0 0.0
        %592 = vmatprep.subr.mxu0 0.0
        %593 = vmatpush2.msra.mxu0 0.0
        %594 = vmatprep.subr.mxu0 0.0
        %595 = vmatpush2.msra.mxu0 0.0
        %596 = vmatprep.subr.mxu0 0.0
        %597 = vmatpush2.msra.mxu0 0.0
        %598 = vmatprep.subr.mxu0 0.0
        %599 = vmatpush2.msra.mxu0 0.0
        %600 = vmatprep.subr.mxu0 0.0
        %601 = vmatpush2.msra.mxu0 0.0
        %602 = vmatprep.subr.mxu0 0.0
        %603 = vmatpush2.msra.mxu0 0.0
        %604 = vmatprep.subr.mxu0 0.0
        %605 = vmatpush2.msra.mxu0 0.0
        %606 = vmatprep.subr.mxu0 0.0
        %607 = vmatpush2.msra.mxu0 0.0
        %608 = vmatprep.subr.mxu0 0.0
        %609 = vmatpush2.msra.mxu0 0.0
        %610 = vmatprep.subr.mxu0 0.0
        %611 = vmatpush2.msra.mxu0 0.0
        %612 = vmatprep.subr.mxu0 0.0
        %613 = vmatpush2.msra.mxu0 0.0
        %614 = vmatprep.mubr.f32.mxu0 0.0
        %615 = vmatmul.mubr.f32.gmra.mxu0 %v477
        %v616 = vpop.f32.mrf.mxu0
        %v617 = vadd.f32 %v474, %v616
        %v618 = vpop.f32.mrf.mxu0
        %v619 = vadd.f32 %v474, %v618
        %620 = vdwg.mxu0
        %v625 = vcombine.low %v546, %v548
        %v626 = vcombine.low %v617, %v619
        %v628 = vunpack.c.l.s4 1966171168
        %v629 = vunpack.c.0.s8 %v628
        %v630 = vlaneseq
        %v631 = vshrl.u32 %v630, 7
        %v632 = vsub.s32 %v629, %v631
        %v633 = vrot.slane %v625, %v632
        %v635 = vunpack.c.l.s4 1966171168
        %v636 = vunpack.c.0.s8 %v635
        %v637 = vlaneseq
        %v638 = vshrl.u32 %v637, 7
        %v639 = vsub.s32 %v636, %v638
        %v640 = vrot.slane %v626, %v639
        %v641 = vcombine.low %v633, %v640
        %v643 = vunpack.c.l.s4 1966171168
        %v644 = vunpack.c.0.s8 %v643
        %v645 = vlaneseq
        %v646 = vshrl.u32 %v645, 7
        %v647 = vsub.s32 %v644, %v646
        %v648 = vrot.slane %v641, %v647
        %v650 = vlaneseq
        %vm651 = vcmp.ge.s32.totalorder %v650, 0
        %vm652 = vcmp.lt.s32.totalorder %v650, 512
        %vm653 = vmand %vm651, %vm652
        %654 = vst.msk [vmem:[%s262] sm:$0xf] %vm653, %v648
        %s655 = sand.u32 %s158, 1
        %s656 = scalar_lea.sflag [#allocation5], %s655
        %s657 = sand.u32 %s158, 1
        %s658 = smul.addr %s657, 4
        %s659 = scalar_lea.vmem [#allocation6], %s658
        // Predicated region
        $region45: #{tpu_custom_call.1} parent=39 // pred_check
          %p660 = pneg %p168
        $region46: #{tpu_custom_call.1} parent=39 // pred_check_branch
          %662 = sbr.rel (%p660) target = $region48
        $region47: #{tpu_custom_call.1} parent=39 // pred_region
          %s663 = smul.u32 4, %s29
          %s665 = ssub.s32 64, 64
          %666 = vsyncadd %s656, %s665
          %s667 = smul.addr %s28, 4
          %s668 = sadd.s32 %s663, %s667
          %s669 = smul.addr %s668, 16
          %s670 = scalar_lea.hbm %s5, %s669
          %s672 = sshll.u32 %s659, 4
          %s673 = int_to_ptr.vmem [resolvable:$true] %s672
          %675 = dma.vmem_to_hbm [thread:$0]  %s673, 64, %s670, %s656
        $region48: #{tpu_custom_call.1} parent=39 // pred_fallthru
          _
      $region40: #{tpu_custom_call.1} parent=5 // pred_fallthru
        _
      %p676 = scmp.le.s32.totalorder 2, %s19
      // Predicated region
      $region49: #{tpu_custom_call.1} parent=5 // pred_check
        %p677 = pneg %p676
      $region50: #{tpu_custom_call.1} parent=5 // pred_check_branch
        %679 = sbr.rel (%p677) target = $region52
      $region51: #{tpu_custom_call.1} parent=5 // pred_region
        %s680 = ssub.s32 %s19, 2
        // Predicated region
        $region53: #{tpu_custom_call.1} parent=51 // pred_check
          %p681 = pneg %p174
        $region54: #{tpu_custom_call.1} parent=51 // pred_check_branch
          %683 = sbr.rel (%p681) target = $region56
        $region55: #{tpu_custom_call.1} parent=51 // pred_region
          %s684 = sand.u32 %s159, 1
          %s685 = scalar_lea.sflag [#allocation5], %s684
          %s686 = sand.u32 %s159, 1
          %s687 = smul.addr %s686, 4
          %s688 = scalar_lea.vmem [#allocation6], %s687
          %689 = dma.done %s685, 64
        $region56: #{tpu_custom_call.1} parent=51 // pred_fallthru
          _
      $region52: #{tpu_custom_call.1} parent=5 // pred_fallthru
        _
    $region6: #{tpu_custom_call.1} parent=1 // loop_footer
      %s23 = sadd.s32 1, %s19
    $region7: #{tpu_custom_call.1} parent=1 // loop_footer_branch
      %18 = sbr.rel target = $region3
    $region8: #{tpu_custom_call.1} parent=1 // loop_exit
      _
    %690 = vsyncpa [#allocation4], 1
    %s691 = scalar_lea.sflag [#allocation4], 1
    %692 = vsyncpa %s691, 1
    %693 = vsyncpa [#allocation5], 1
    %s694 = scalar_lea.sflag [#allocation5], 1
    %695 = vsyncpa %s694, 1

</llo_original>
